<compile_context>
chip_gen: v5e
topology: v5e:2x2
jax: 0.10.0
libtpu: 0.0.40
codegen_flags: <defaults>
</compile_context>

<pallas_src>
import math

import jax
import jax.numpy as jnp
from jax.experimental import pallas as pl
from jax.experimental.pallas import tpu as pltpu


def _round_up(a, b):
    return -(-a // b) * b


def _round_down_to(a, b):
    return max(b, (a // b) * b)


def _vmem_capacity_bytes():
    try:
        return int(pltpu.get_tpu_info().vmem_capacity_bytes)
    except Exception:
        return 64 << 20  # conservative: v7x per-TensorCore VMEM


def _projection_kernel(x_ref, w_ref, o_ref):
    # x_ref: (tm, H)   activation tile (constant across the inner M loop when M
    #                  fits one tile -> fetched once)
    # w_ref: (H, tn)   pre-transposed weight tile; index depends only on the
    #                  outer grid axis -> each weight tile DMA'd exactly once
    # o_ref: (tm, tn)  logits tile
    o_ref[...] = jnp.dot(
        x_ref[...], w_ref[...], preferred_element_type=jnp.float32
    ).astype(o_ref.dtype)


def prepare_projection_weight(weight, *, compute_dtype=None, lane_multiple=128):
    """One-time parameter setup (call ONCE at init, not per forward).

    weight : (target_dim, H) -- torch.nn.Linear(H, target_dim, bias=False).weight
    Returns the weight transposed to (H, target_dim_padded), with target_dim
    zero-padded up to `lane_multiple` and optionally cast to `compute_dtype`.
    """
    n, h = weight.shape
    w = weight.T  # (H, N): vocab dim on lanes, standard MXU RHS layout
    n_pad = _round_up(n, lane_multiple)
    if n_pad != n:
        w = jnp.pad(w, ((0, 0), (0, n_pad - n)))
    if compute_dtype is not None:
        w = w.astype(compute_dtype)
    return w


def next_item_prediction_forward(
    inputs,
    prepared_weight,
    target_dim,
    targets=None,
    *,
    tile_m=512,
    tile_n=1024,
    compute_dtype=None,
    out_dtype=None,
):
    """Equivalent to _NextItemPredictionTask.forward with the default
    (mlp_head / no weight tying, no sampled softmax) configuration.

    inputs          : (..., H) array
    prepared_weight : (H, target_dim_padded) array from prepare_projection_weight
    target_dim      : original (unpadded) number of output classes
    compute_dtype   : optional dtype (e.g. jnp.bfloat16) for the activations;
                      the prepared weight should already be in this dtype.
    out_dtype       : logits dtype (default: inputs.dtype; bf16 halves the
                      (M,N) logits HBM write for large-vocab projections).
    returns (logits with shape (..., target_dim), targets)
    """
    h = inputs.shape[-1]
    lead_shape = inputs.shape[:-1]
    out_dtype = inputs.dtype if out_dtype is None else out_dtype

    h_w, n_pad = prepared_weight.shape
    assert h_w == h, "prepared_weight hidden dim mismatch"
    n = int(target_dim)
    assert n <= n_pad

    x = inputs.reshape(-1, h)  # (M, H)
    m = x.shape[0]
    if compute_dtype is not None:
        x = x.astype(compute_dtype)  # small (M,H) cast; weight already prepared

    x_b = jnp.dtype(x.dtype).itemsize
    w_b = jnp.dtype(prepared_weight.dtype).itemsize
    o_b = jnp.dtype(out_dtype).itemsize

    # --- generation-aware VMEM budget (never request the whole v7x 64 MiB) ---
    capacity = _vmem_capacity_bytes()
    vmem_budget = max(capacity - (16 << 20), 16 << 20)

    # --- tile selection: clamp to array extents, (8, 128) layout grid ---
    tm = max(8, _round_up(min(tile_m, _round_up(m, 8)), 8))
    tn = max(128, _round_up(min(tile_n, n_pad), 128))

    def footprint(tm_, tn_):
        # double-buffered input tiles + double-buffered output tile
        return 2 * (tm_ * h * x_b + h * tn_ * w_b + tm_ * tn_ * o_b)

    while footprint(tm, tn) > vmem_budget and (tm > 8 or tn > 128):
        if tn >= tm and tn > 128:
            tn = _round_down_to(tn // 2, 128)
        elif tm > 8:
            tm = _round_down_to(tm // 2, 8)
        else:
            break

    # N on the OUTER (slow) axis: weight tile index depends only on it, so each
    # weight tile is fetched from HBM exactly once; the small activation tile
    # re-streams across the outer loop instead. Both axes are independent
    # ("parallel"), letting megacore/2-TC chips split the vocab axis.
    grid = (pl.cdiv(n_pad, tn), pl.cdiv(m, tm))

    vmem_limit = int(
        min(vmem_budget, max(footprint(tm, tn) * 3 // 2 + (2 << 20), 16 << 20))
    )

    cost = pl.CostEstimate(
        flops=2 * m * n_pad * h,
        transcendentals=0,
        bytes_accessed=m * h * x_b + h * n_pad * w_b + m * n * o_b,
    )

    logits = pl.pallas_call(
        _projection_kernel,
        out_shape=jax.ShapeDtypeStruct((m, n), out_dtype),
        grid_spec=pltpu.PrefetchScalarGridSpec(
            num_scalar_prefetch=0,
            grid=grid,
            in_specs=[
                pl.BlockSpec((tm, h), lambda j, i: (i, 0)),   # activation tile
                pl.BlockSpec((h, tn), lambda j, i: (0, j)),   # weight tile (outer axis only)
            ],
            out_specs=pl.BlockSpec((tm, tn), lambda j, i: (i, j)),
        ),
        compiler_params=pltpu.CompilerParams(
            dimension_semantics=("parallel", "parallel"),
            vmem_limit_bytes=vmem_limit,
        ),
        cost_estimate=cost,
    )(x, prepared_weight)

    logits = logits.reshape(*lead_shape, n)
    return logits, targets


def init_linear_weight(key, target_dim, hidden):
    # Matches torch.nn.Linear default init: kaiming_uniform_(a=sqrt(5)), which for
    # a 2-D weight reduces to U(-1/sqrt(fan_in), 1/sqrt(fan_in)).
    bound = 1.0 / math.sqrt(hidden)
    return jax.random.uniform(
        key, (target_dim, hidden), minval=-bound, maxval=bound, dtype=jnp.float32
    )


if __name__ == "__main__":
    key = jax.random.PRNGKey(0)
    k_x, k_w, k_t = jax.random.split(key, 3)

    batch, seq, hidden = 2, 8, 32
    target_dim = 250  # deliberately NOT a multiple of 128 to exercise masked tail

    inputs = jax.random.normal(k_x, (batch, seq, hidden), dtype=jnp.float32)
    weight = init_linear_weight(k_w, target_dim, hidden)  # PyTorch (N, H) layout
    targets = jax.random.randint(k_t, (batch, seq), 0, target_dim, dtype=jnp.int32)

    # plain-JAX reference of the PyTorch forward (mlp_head path): X @ W.T, no bias
    ref = (inputs.reshape(-1, hidden) @ weight.T).reshape(batch, seq, target_dim)

    # --- f32 path (weight prepared ONCE, outside the per-call path) ---
    w_f32 = prepare_projection_weight(weight)
    logits_f32, out_targets = next_item_prediction_forward(
        inputs, w_f32, target_dim, targets
    )
    logits_f32 = jax.block_until_ready(logits_f32)
    assert logits_f32.shape == (batch, seq, target_dim)
    assert jnp.allclose(logits_f32, ref, atol=1e-5, rtol=1e-5)
    assert out_targets is targets

    # --- bf16 compute path (f32 accumulation), looser tolerance ---
    w_bf16 = prepare_projection_weight(weight, compute_dtype=jnp.bfloat16)
    logits_bf16, _ = next_item_prediction_forward(
        inputs, w_bf16, target_dim, targets, compute_dtype=jnp.bfloat16
    )
    logits_bf16 = jax.block_until_ready(logits_bf16)
    assert logits_bf16.shape == (batch, seq, target_dim)
    assert jnp.allclose(logits_bf16, ref, atol=3e-2, rtol=3e-2)

    print("KERNEL_OK")
</pallas_src>

<mosaic_0001>
module attributes {stable_mosaic.version = 11 : i64} {
  func.func @_projection_kernel(%arg0: i32, %arg1: i32, %arg2: memref<16x32xf32, #tpu.memory_space<vmem>>, %arg3: memref<32x256xf32, #tpu.memory_space<vmem>>, %arg4: memref<16x256xf32, #tpu.memory_space<vmem>>) attributes {dimension_semantics = [#tpu.dimension_semantics<parallel>, #tpu.dimension_semantics<parallel>], iteration_bounds = array<i64: 1, 1>, scalar_prefetch = 0 : i64, scratch_operands = 0 : i64, tpu.core_type = #tpu.core_type<tc>, window_params = [{transform_indices = @transform_0, window_bounds = array<i64: 16, 32>}, {transform_indices = @transform_1, window_bounds = array<i64: 32, 256>}, {transform_indices = @transform_2, window_bounds = array<i64: 16, 256>}]} {
    %c0 = arith.constant 0 : index
    %c0_0 = arith.constant 0 : index
    %0 = vector.load %arg2[%c0, %c0_0] : memref<16x32xf32, #tpu.memory_space<vmem>>, vector<16x32xf32>
    %c0_1 = arith.constant 0 : index
    %c0_2 = arith.constant 0 : index
    %1 = vector.load %arg3[%c0_1, %c0_2] : memref<32x256xf32, #tpu.memory_space<vmem>>, vector<32x256xf32>
    %cst = arith.constant dense<0.000000e+00> : vector<16x256xf32>
    %2 = tpu.matmul %0, %1, %cst {dimension_numbers = #tpu.dot_dimension_numbers<[1], [0], [0], [1], [0, 0, 1, 1], [], []>} : vector<16x32xf32>, vector<32x256xf32>, vector<16x256xf32> -> vector<16x256xf32>
    %c0_3 = arith.constant 0 : index
    %c0_4 = arith.constant 0 : index
    %3 = vector.load %arg4[%c0_3, %c0_4] : memref<16x256xf32, #tpu.memory_space<vmem>>, vector<16x256xf32>
    tpu.vector_store %arg4[%c0_3, %c0_4], %2 {strides = array<i32>} : memref<16x256xf32, #tpu.memory_space<vmem>>, vector<16x256xf32>,
    return
  }
  func.func @transform_0(%arg0: i32, %arg1: i32) -> (i32, i32) {
    %c0_i32 = arith.constant 0 : i32
    %c0_i32_0 = arith.constant 0 : i32
    return %arg1, %c0_i32 : i32, i32
  }
  func.func @transform_1(%arg0: i32, %arg1: i32) -> (i32, i32) {
    %c0_i32 = arith.constant 0 : i32
    %c0_i32_0 = arith.constant 0 : i32
    return %c0_i32, %arg0 : i32, i32
  }
  func.func @transform_2(%arg0: i32, %arg1: i32) -> (i32, i32) {
    %c0_i32 = arith.constant 0 : i32
    return %arg1, %arg0 : i32, i32
  }
}

</mosaic_0001>

<llo_original>
// kernel: tpu_custom_call.1
$region0: #{tpu_custom_call.1}
  #allocation0 [shape = 'u32[]', space=smem, size = 0x4, offset = 0x4, fixed_abs, tag = 'smem constant byte address 0x4 - core index']
  #allocation1 [shape = 'u32[72,128]{1,0:T(1,128)}', space=vmem, size = 0x9000, scoped, tag = 'internal scratch']
  %s0 = inlined_call_operand.hbm [shape: f32[16,32], index: 0, kind: input, shape index: {}]
  %s1 = inlined_call_operand.hbm [shape: f32[32,256], index: 1, kind: input, shape index: {}]
  %s2 = inlined_call_operand.hbm [shape: f32[16,250], index: 2, kind: output, shape index: {}]
  %s3 = sld [smem:[#allocation0]]
  $region26: #{tpu_custom_call.1} parent=0
    _
  %s5 = ssub.s32 1, %s3
  %s6 = scalar_select 0, %s5, %s3
  $region1: #{tpu_custom_call.1} parent=0
    #allocation2 [shape = 'u8[8192]{0}', space=vmem, size = 0x2000, scoped, tag = 'input window, operand 0, single buffered']
    #allocation3 [shape = 's32[1]{0}', space=sflag, size = 0x4, scoped, tag = 'scoped memory for tpu_custom_call.1']
    #allocation4 [shape = 's32[1]{0}', space=sflag, size = 0x4, scoped, tag = 'scoped memory for tpu_custom_call.1']
    #allocation5 [shape = 'u8[32768]{0}', space=vmem, size = 0x8000, scoped, tag = 'input window, operand 1, single buffered']
    #allocation6 [shape = 's32[1]{0}', space=sflag, size = 0x4, scoped, tag = 'scoped memory for tpu_custom_call.1']
    #allocation7 [shape = 'u8[16384]{0}', space=vmem, size = 0x4000, scoped, tag = 'output window, operand 0, single buffered']
    %7 = vsyncpa [#allocation3], 0
    %8 = vsyncpa [#allocation6], 0
    %9 = vsyncpa [#allocation4], 0
    // Predicated region
    $region2: #{tpu_custom_call.1} parent=1 // pred_check
      _
    $region3: #{tpu_custom_call.1} parent=1 // pred_check_branch
      %11 = sbr.rel (0) target = $region5
    $region4: #{tpu_custom_call.1} parent=1 // pred_region
      %13 = vsyncadd [#allocation3], 0
      %s14 = sshll.u32 %s0, 4
      %s15 = int_to_ptr.hbm [resolvable:$true] %s14
      %s16 = sshll.u32 [#allocation2], 4
      %s17 = int_to_ptr.vmem [resolvable:$true] %s16
      %22 = dma.hbm_to_vmem [thread:$0]  %s15, 256, %s17, [#allocation3], 128, 128, 8
    $region5: #{tpu_custom_call.1} parent=1 // pred_fallthru
      _
    // Predicated region
    $region6: #{tpu_custom_call.1} parent=1 // pred_check
      _
    $region7: #{tpu_custom_call.1} parent=1 // pred_check_branch
      %24 = sbr.rel (0) target = $region9
    $region8: #{tpu_custom_call.1} parent=1 // pred_region
      %26 = vsyncadd [#allocation6], 0
      %s27 = sshll.u32 %s1, 4
      %s28 = int_to_ptr.hbm [resolvable:$true] %s27
      %s29 = sshll.u32 [#allocation5], 4
      %s30 = int_to_ptr.vmem [resolvable:$true] %s29
      %35 = dma.hbm_to_vmem [thread:$0]  %s28, 1024, %s30, [#allocation6], 256, 256, 16
    $region9: #{tpu_custom_call.1} parent=1 // pred_fallthru
      _
    // Predicated region
    $region10: #{tpu_custom_call.1} parent=1 // pred_check
      _
    $region11: #{tpu_custom_call.1} parent=1 // pred_check_branch
      %37 = sbr.rel (0) target = $region13
    $region12: #{tpu_custom_call.1} parent=1 // pred_region
      %39 = dma.done [#allocation3], 256
    $region13: #{tpu_custom_call.1} parent=1 // pred_fallthru
      _
    // Predicated region
    $region14: #{tpu_custom_call.1} parent=1 // pred_check
      _
    $region15: #{tpu_custom_call.1} parent=1 // pred_check_branch
      %41 = sbr.rel (0) target = $region17
    $region16: #{tpu_custom_call.1} parent=1 // pred_region
      %43 = dma.done [#allocation6], 1024
    $region17: #{tpu_custom_call.1} parent=1 // pred_fallthru
      _
    %v44 = vld [vmem:[#allocation2] sm:$0xff]
    %v45 = vld [vmem:[#allocation2 + $0x8] sm:$0xff]
    %v46 = vld [vmem:[#allocation5] sm:$0xff]
    %v47 = vld [vmem:[#allocation5 + $0x8] sm:$0xff]
    %v48 = vld [vmem:[#allocation5 + $0x10] sm:$0xff]
    %v49 = vld [vmem:[#allocation5 + $0x18] sm:$0xff]
    %v50 = vld [vmem:[#allocation5 + $0x20] sm:$0xff]
    %v51 = vld [vmem:[#allocation5 + $0x28] sm:$0xff]
    %v52 = vld [vmem:[#allocation5 + $0x30] sm:$0xff]
    %v53 = vld [vmem:[#allocation5 + $0x38] sm:$0xff]
    %vm54 = vcmask 261120
    %v56 = vsel %vm54, %v44, 0
    %v59 = vsel %vm54, %v45, 0
    %61 = vmatpush.msra.mxu0 0.0
    %62 = vmatpush.msra.mxu0 0.0
    %63 = vmatpush.msra.mxu0 0.0
    %64 = vmatpush.msra.mxu0 0.0
    %65 = vmatpush.msra.mxu0 0.0
    %66 = vmatpush.msra.mxu0 0.0
    %67 = vmatpush.msra.mxu0 0.0
    %68 = vmatpush.msra.mxu0 0.0
    %69 = vmatpush.msra.mxu0 0.0
    %70 = vmatpush.msra.mxu0 0.0
    %71 = vmatpush.msra.mxu0 0.0
    %72 = vmatpush.msra.mxu0 0.0
    %73 = vmatpush.msra.mxu0 %v52
    %74 = vmatpush.msra.mxu0 %v50
    %75 = vmatpush.msra.mxu0 %v48
    %76 = vmatpush.msra.mxu0 %v46
    %77 = vmatmul.f32.gmra.mxu0 %v56
    %v78 = vpop.f32.mrf.mxu0
    %v79 = vadd.f32 0.0, %v78
    %80 = vmatmul.f32.gmra.mxu0 %v59
    %v81 = vpop.f32.mrf.mxu0
    %v82 = vadd.f32 0.0, %v81
    %83 = vdwg.mxu0
    %84 = vmatpush.msra.mxu0 0.0
    %85 = vmatpush.msra.mxu0 0.0
    %86 = vmatpush.msra.mxu0 0.0
    %87 = vmatpush.msra.mxu0 0.0
    %88 = vmatpush.msra.mxu0 0.0
    %89 = vmatpush.msra.mxu0 0.0
    %90 = vmatpush.msra.mxu0 0.0
    %91 = vmatpush.msra.mxu0 0.0
    %92 = vmatpush.msra.mxu0 0.0
    %93 = vmatpush.msra.mxu0 0.0
    %94 = vmatpush.msra.mxu0 0.0
    %95 = vmatpush.msra.mxu0 0.0
    %96 = vmatpush.msra.mxu0 %v53
    %97 = vmatpush.msra.mxu0 %v51
    %98 = vmatpush.msra.mxu0 %v49
    %99 = vmatpush.msra.mxu0 %v47
    %100 = vmatmul.f32.gmra.mxu0 %v56
    %v101 = vpop.f32.mrf.mxu0
    %v102 = vadd.f32 0.0, %v101
    %103 = vmatmul.f32.gmra.mxu0 %v59
    %v104 = vpop.f32.mrf.mxu0
    %v105 = vadd.f32 0.0, %v104
    %106 = vdwg.mxu0
    %107 = vst [vmem:[#allocation7] sm:$0xff] %v79
    %108 = vst [vmem:[#allocation7 + $0x8] sm:$0xff] %v102
    %109 = vst [vmem:[#allocation7 + $0x10] sm:$0xff] %v82
    %110 = vst [vmem:[#allocation7 + $0x18] sm:$0xff] %v105
    // Predicated region
    $region18: #{tpu_custom_call.1} parent=1 // pred_check
      _
    $region19: #{tpu_custom_call.1} parent=1 // pred_check_branch
      %112 = sbr.rel (0) target = $region21
    $region20: #{tpu_custom_call.1} parent=1 // pred_region
      %114 = vsyncadd [#allocation4], 0
      %s115 = sshll.u32 [#allocation7], 4
      %s116 = int_to_ptr.vmem [resolvable:$true] %s115
      %s117 = sshll.u32 %s2, 4
      %s118 = int_to_ptr.hbm [resolvable:$true] %s117
      %123 = dma.vmem_to_hbm [thread:$0]  %s116, 512, %s118, [#allocation4], 256, 256, 16
    $region21: #{tpu_custom_call.1} parent=1 // pred_fallthru
      _
    // Predicated region
    $region22: #{tpu_custom_call.1} parent=1 // pred_check
      _
    $region23: #{tpu_custom_call.1} parent=1 // pred_check_branch
      %125 = sbr.rel (0) target = $region25
    $region24: #{tpu_custom_call.1} parent=1 // pred_region
      %127 = dma.done [#allocation4], 512
    $region25: #{tpu_custom_call.1} parent=1 // pred_fallthru
      _
    %128 = vsyncpa [#allocation3], 1
    %129 = vsyncpa [#allocation6], 1
    %130 = vsyncpa [#allocation4], 1

</llo_original>
